<compile_context>
chip_gen: v6e
topology: v6e:2x2x1
jax: 0.10.0
libtpu: 0.0.40
codegen_flags: <defaults>
</compile_context>

<pallas_src>
import functools
import math

import jax
import jax.numpy as jnp
from jax import lax
from jax.experimental import pallas as pl
from jax.experimental.pallas import tpu as pltpu

LANE = 128      # lane width: pad feature (N) dims to this
SUBLANE = 8     # f32 sublane granule for the batch tile
TM_TARGET = 256  # batch-tile rows (fills MXU rows on v6e/v7x; multiple of 8)


def _round_up(n, m):
    return ((n + m - 1) // m) * m


def _mlp_fused_kernel(*refs, n_stack):
    """One batch-tile of the fused MLP.

    refs (n_stack > 0):  x, w0, b0, w_stack, b_stack, w_out, b_out, o
    refs (n_stack == 0): x, w0, b0, w_out, b_out, o

    x       : (TM, in_dim)   activation tile (streamed per grid step)
    w0      : (in_dim, Hp)   bf16, pre-transposed / zero-padded, VMEM-resident
    w_stack : (L, Hp, Hp)    bf16, identical hidden->hidden layers, stacked
    w_out   : (Hp, Np)       bf16
    b*      : f32, (1, N) or (L, 1, N)
    o       : (TM, Np)       padded, lane-dense output tile
    """
    x_ref, o_ref = refs[0], refs[-1]
    w0_ref, b0_ref = refs[1], refs[2]
    if n_stack > 0:
        wstk_ref, bstk_ref, wout_ref, bout_ref = refs[3], refs[4], refs[5], refs[6]
    else:
        wout_ref, bout_ref = refs[3], refs[4]

    cdtype = w0_ref.dtype  # bf16 MXU operand dtype

    # Hidden layer 0: bf16 matmul, bias-add + ReLU on the f32 accumulator.
    h = x_ref[...].astype(cdtype)
    acc = jnp.dot(h, w0_ref[...], preferred_element_type=jnp.float32) + b0_ref[...]
    h = jnp.maximum(acc, 0.0).astype(cdtype)

    # Remaining (identical) hidden layers: fori_loop bounds live ranges so only
    # one stacked layer's weights/activation is live at a time.
    if n_stack > 0:
        def body(l, h):
            acc = (jnp.dot(h, wstk_ref[l], preferred_element_type=jnp.float32)
                   + bstk_ref[l])
            return jnp.maximum(acc, 0.0).astype(cdtype)
        h = lax.fori_loop(0, n_stack, body, h)

    # Output layer: no ReLU.
    out = jnp.dot(h, wout_ref[...], preferred_element_type=jnp.float32) + bout_ref[...]
    o_ref[...] = out.astype(o_ref.dtype)


@functools.partial(jax.jit, static_argnames=("out_dim",))
def mlp_forward(x, kparams, *, out_dim):
    """Run the fused MLP kernel. kparams comes from prepare_kernel_params."""
    w0, b0, w_stack, b_stack, w_out, b_out = kparams
    n_stack = 0 if w_stack is None else w_stack.shape[0]

    M, K0 = x.shape
    n_pad = w_out.shape[1]

    # Batch tiling: TM rows per grid step (pad M up to a multiple of TM).
    tm = min(TM_TARGET, _round_up(M, SUBLANE))
    m_pad = _round_up(M, tm)
    if m_pad != M:
        x = jnp.zeros((m_pad, K0), x.dtype).at[:M].set(x)

    weight_args = [w0, b0] + ([w_stack, b_stack] if n_stack else []) + [w_out, b_out]
    inputs = [x] + weight_args

    # VMEM budget: resident weights/biases (x2 for pipeline buffers) +
    # double-buffered x/out tiles + slack for intermediates; capped at v7x's
    # 64 MiB physical VMEM so the same config is safe on every generation.
    weight_bytes = sum(int(a.size) * a.dtype.itemsize for a in weight_args)
    tile_bytes = 2 * tm * (K0 + n_pad) * x.dtype.itemsize
    vmem_limit = int(min(2 * weight_bytes + tile_bytes + (16 << 20), 64 << 20))

    flops = 2 * m_pad * sum(
        w.shape[-2] * w.shape[-1] * (w.shape[0] if w.ndim == 3 else 1)
        for w in weight_args[0::2]
    )
    bytes_accessed = (sum(int(a.size) * a.dtype.itemsize for a in inputs)
                      + m_pad * n_pad * x.dtype.itemsize)

    in_specs = [pl.BlockSpec((tm, K0), lambda i: (i, 0))]        # streamed x tile
    in_specs += [                                                # resident weights
        pl.BlockSpec(a.shape, lambda i, nd=a.ndim: (0,) * nd) for a in weight_args
    ]

    out_pad = pl.pallas_call(
        functools.partial(_mlp_fused_kernel, n_stack=n_stack),
        out_shape=jax.ShapeDtypeStruct((m_pad, n_pad), x.dtype),
        grid=(m_pad // tm,),
        in_specs=in_specs,
        out_specs=pl.BlockSpec((tm, n_pad), lambda i: (i, 0)),
        compiler_params=pltpu.CompilerParams(
            dimension_semantics=("parallel",),   # shard batch tiles across TCs (v7x)
            vmem_limit_bytes=vmem_limit,
        ),
        cost_estimate=pl.CostEstimate(
            flops=flops, transcendentals=0, bytes_accessed=bytes_accessed
        ),
    )(*inputs)

    # Padded lanes/rows are exact zeros; slice them off in the wrapper (a
    # downstream consumer that tolerates padded lanes could skip this copy).
    return out_pad[:M, :out_dim]


def init_mlp_params(key, in_dim, out_dim, hidden_dim, hidden_layers):
    """PyTorch-layout params ((out,in) weights, (out,) biases), nn.Linear-style init."""
    params = []
    fan_ins = [in_dim] + [hidden_dim] * hidden_layers
    fan_outs = [hidden_dim] * hidden_layers + [out_dim]
    for fan_in, fan_out in zip(fan_ins, fan_outs):
        key, kw, kb = jax.random.split(key, 3)
        bound = 1.0 / math.sqrt(fan_in)
        w = jax.random.uniform(kw, (fan_out, fan_in), jnp.float32, -bound, bound)
        b = jax.random.uniform(kb, (fan_out,), jnp.float32, -bound, bound)
        params.append((w, b))
    return params


def prepare_kernel_params(params, compute_dtype=jnp.bfloat16):
    """One-time prep for the kernel.

    * Transpose every weight to (K, N); zero-pad N (and K for deeper layers) to
      multiples of 128.  Padded cols/rows are zero, so the padded math matches
      the reference exactly and padded lanes stay zero through bias+ReLU.
    * Cast weights to bf16 (native MXU operand); biases stay f32 (the epilogue
      bias-add runs on the f32 accumulator; the bytes are negligible).
    * Stack the identical hidden->hidden layers into (L, K, N)/(L, 1, N) so the
      kernel iterates them with lax.fori_loop.
    NOTE: hidden_dim=32 still pads to 128 lanes -> ~4x padded MXU/DMA work per
    hidden layer; pick 128-multiple hidden dims at model-config time if possible.
    """
    hidden_layers = len(params) - 1
    in_dim = params[0][0].shape[1]
    hidden_dim = params[0][0].shape[0]
    out_dim = params[-1][0].shape[0]
    h_pad = _round_up(hidden_dim, LANE)
    o_pad = _round_up(out_dim, LANE)

    def pack(w, b, k_pad, n_pad):
        fan_out, fan_in = w.shape
        wt = (jnp.zeros((k_pad, n_pad), compute_dtype)
              .at[:fan_in, :fan_out].set(w.T.astype(compute_dtype)))
        bp = jnp.zeros((1, n_pad), jnp.float32).at[0, :fan_out].set(b)
        return wt, bp

    w0, b0 = pack(*params[0], in_dim, h_pad)          # layer 0 keeps true K=in_dim
    if hidden_layers > 1:
        stk = [pack(*params[i], h_pad, h_pad) for i in range(1, hidden_layers)]
        w_stack = jnp.stack([w for w, _ in stk])
        b_stack = jnp.stack([b for _, b in stk])
    else:
        w_stack = b_stack = None
    w_out, b_out = pack(*params[-1], h_pad, o_pad)
    return (w0, b0, w_stack, b_stack, w_out, b_out)


def mlp_reference(x, params):
    """Pure-JAX f32 reference mirroring the PyTorch MLP.forward."""
    n = len(params)
    for i, (w, b) in enumerate(params):
        x = x @ w.T + b
        if i != n - 1:
            x = jnp.maximum(x, 0.0)
    return x


if __name__ == "__main__":
    in_dim, out_dim, hidden_dim, hidden_layers = 16, 8, 32, 3
    batch = 8

    key = jax.random.PRNGKey(0)
    key, kx = jax.random.split(key)
    x = jax.random.normal(kx, (batch, in_dim), jnp.float32)

    params = init_mlp_params(key, in_dim, out_dim, hidden_dim, hidden_layers)
    kparams = prepare_kernel_params(params)  # one-time prep (bf16, padded, stacked)

    out = mlp_forward(x, kparams, out_dim=out_dim)
    out = jax.block_until_ready(out)

    ref = mlp_reference(x, params)
    assert out.shape == (batch, out_dim)
    # Kernel matmuls use bf16 MXU operands -> compare to the f32 reference at a
    # bf16-appropriate tolerance.
    err = float(jnp.max(jnp.abs(out - ref)))
    assert err < 5e-2, f"max abs err {err}"

    print("KERNEL_OK")
</pallas_src>

<mosaic_0001>
module attributes {stable_mosaic.version = 11 : i64} {
  func.func @_mlp_fused_kernel(%arg0: i32, %arg1: memref<8x16xf32, #tpu.memory_space<vmem>>, %arg2: memref<16x128xbf16, #tpu.memory_space<vmem>>, %arg3: memref<1x128xf32, #tpu.memory_space<vmem>>, %arg4: memref<2x128x128xbf16, #tpu.memory_space<vmem>>, %arg5: memref<2x1x128xf32, #tpu.memory_space<vmem>>, %arg6: memref<128x128xbf16, #tpu.memory_space<vmem>>, %arg7: memref<1x128xf32, #tpu.memory_space<vmem>>, %arg8: memref<8x128xf32, #tpu.memory_space<vmem>>) attributes {dimension_semantics = [#tpu.dimension_semantics<parallel>], iteration_bounds = array<i64: 1>, scalar_prefetch = 0 : i64, scratch_operands = 0 : i64, tpu.core_type = #tpu.core_type<tc>, window_params = [{transform_indices = @transform_0, window_bounds = array<i64: 8, 16>}, {pipeline_mode = #tpu.pipeline_mode<synchronous>, transform_indices = @transform_1, window_bounds = array<i64: 16, 128>}, {pipeline_mode = #tpu.pipeline_mode<synchronous>, transform_indices = @transform_2, window_bounds = array<i64: 1, 128>}, {pipeline_mode = #tpu.pipeline_mode<synchronous>, transform_indices = @transform_3, window_bounds = array<i64: 2, 128, 128>}, {pipeline_mode = #tpu.pipeline_mode<synchronous>, transform_indices = @transform_4, window_bounds = array<i64: 2, 1, 128>}, {pipeline_mode = #tpu.pipeline_mode<synchronous>, transform_indices = @transform_5, window_bounds = array<i64: 128, 128>}, {pipeline_mode = #tpu.pipeline_mode<synchronous>, transform_indices = @transform_6, window_bounds = array<i64: 1, 128>}, {transform_indices = @transform_7, window_bounds = array<i64: 8, 128>}]} {
    %c0 = arith.constant 0 : index
    %c0_0 = arith.constant 0 : index
    %0 = vector.load %arg1[%c0, %c0_0] : memref<8x16xf32, #tpu.memory_space<vmem>>, vector<8x16xf32>
    %1 = arith.truncf %0 : vector<8x16xf32> to vector<8x16xbf16>
    %c0_1 = arith.constant 0 : index
    %c0_2 = arith.constant 0 : index
    %2 = vector.load %arg2[%c0_1, %c0_2] : memref<16x128xbf16, #tpu.memory_space<vmem>>, vector<16x128xbf16>
    %cst = arith.constant dense<0.000000e+00> : vector<8x128xf32>
    %3 = tpu.matmul %1, %2, %cst {dimension_numbers = #tpu.dot_dimension_numbers<[1], [0], [0], [1], [0, 0, 1, 1], [], []>} : vector<8x16xbf16>, vector<16x128xbf16>, vector<8x128xf32> -> vector<8x128xf32>
    %c0_3 = arith.constant 0 : index
    %c0_4 = arith.constant 0 : index
    %4 = vector.load %arg3[%c0_3, %c0_4] : memref<1x128xf32, #tpu.memory_space<vmem>>, vector<1x128xf32>
    %5 = vector.broadcast %4 : vector<1x128xf32> to vector<8x128xf32>
    %6 = arith.addf %3, %5 : vector<8x128xf32>
    %cst_5 = arith.constant 0.000000e+00 : f32
    %7 = vector.broadcast %cst_5 : f32 to vector<8x128xf32>
    %8 = arith.maximumf %6, %7 : vector<8x128xf32>
    %9 = arith.truncf %8 : vector<8x128xf32> to vector<8x128xbf16>
    %c0_i32 = arith.constant 0 : i32
    %c2_i32 = arith.constant 2 : i32
    %10 = arith.addi %c0_i32, %c2_i32 : i32
    %c1_i32 = arith.constant 1 : i32
    %11 = scf.for %arg9 = %c0_i32 to %10 step %c1_i32 iter_args(%arg10 = %9) -> (vector<8x128xbf16>)  : i32 {
      %18 = arith.index_cast %arg9 : i32 to index
      %c0_14 = arith.constant 0 : index
      %c0_15 = arith.constant 0 : index
      %19 = vector.load %arg4[%18, %c0_14, %c0_15] : memref<2x128x128xbf16, #tpu.memory_space<vmem>>, vector<1x128x128xbf16>
      %20 = vector.shape_cast %19 : vector<1x128x128xbf16> to vector<128x128xbf16>
      %cst_16 = arith.constant dense<0.000000e+00> : vector<8x128xf32>
      %21 = tpu.matmul %arg10, %20, %cst_16 {dimension_numbers = #tpu.dot_dimension_numbers<[1], [0], [0], [1], [0, 0, 1, 1], [], []>} : vector<8x128xbf16>, vector<128x128xbf16>, vector<8x128xf32> -> vector<8x128xf32>
      %22 = arith.index_cast %arg9 : i32 to index
      %c0_17 = arith.constant 0 : index
      %c0_18 = arith.constant 0 : index
      %23 = vector.load %arg5[%22, %c0_17, %c0_18] : memref<2x1x128xf32, #tpu.memory_space<vmem>>, vector<1x1x128xf32>
      %24 = vector.shape_cast %23 : vector<1x1x128xf32> to vector<1x128xf32>
      %25 = vector.broadcast %24 : vector<1x128xf32> to vector<8x128xf32>
      %26 = arith.addf %21, %25 : vector<8x128xf32>
      %cst_19 = arith.constant 0.000000e+00 : f32
      %27 = vector.broadcast %cst_19 : f32 to vector<8x128xf32>
      %28 = arith.maximumf %26, %27 : vector<8x128xf32>
      %29 = arith.truncf %28 : vector<8x128xf32> to vector<8x128xbf16>
      scf.yield %29 : vector<8x128xbf16>
    }
    %c2_i32_6 = arith.constant 2 : i32
    %c0_7 = arith.constant 0 : index
    %c0_8 = arith.constant 0 : index
    %12 = vector.load %arg6[%c0_7, %c0_8] : memref<128x128xbf16, #tpu.memory_space<vmem>>, vector<128x128xbf16>
    %cst_9 = arith.constant dense<0.000000e+00> : vector<8x128xf32>
    %13 = tpu.matmul %11, %12, %cst_9 {dimension_numbers = #tpu.dot_dimension_numbers<[1], [0], [0], [1], [0, 0, 1, 1], [], []>} : vector<8x128xbf16>, vector<128x128xbf16>, vector<8x128xf32> -> vector<8x128xf32>
    %c0_10 = arith.constant 0 : index
    %c0_11 = arith.constant 0 : index
    %14 = vector.load %arg7[%c0_10, %c0_11] : memref<1x128xf32, #tpu.memory_space<vmem>>, vector<1x128xf32>
    %15 = vector.broadcast %14 : vector<1x128xf32> to vector<8x128xf32>
    %16 = arith.addf %13, %15 : vector<8x128xf32>
    %c0_12 = arith.constant 0 : index
    %c0_13 = arith.constant 0 : index
    %17 = vector.load %arg8[%c0_12, %c0_13] : memref<8x128xf32, #tpu.memory_space<vmem>>, vector<8x128xf32>
    tpu.vector_store %arg8[%c0_12, %c0_13], %16 {strides = array<i32>} : memref<8x128xf32, #tpu.memory_space<vmem>>, vector<8x128xf32>,
    return
  }
  func.func @transform_0(%arg0: i32) -> (i32, i32) {
    %c0_i32 = arith.constant 0 : i32
    %c0_i32_0 = arith.constant 0 : i32
    return %arg0, %c0_i32 : i32, i32
  }
  func.func @transform_1(%arg0: i32) -> (i32, i32) {
    %c0_i32 = arith.constant 0 : i32
    %c0_i32_0 = arith.constant 0 : i32
    %c0_i32_1 = arith.constant 0 : i32
    return %c0_i32, %c0_i32_0 : i32, i32
  }
  func.func @transform_2(%arg0: i32) -> (i32, i32) {
    %c0_i32 = arith.constant 0 : i32
    %c0_i32_0 = arith.constant 0 : i32
    %c0_i32_1 = arith.constant 0 : i32
    return %c0_i32, %c0_i32_0 : i32, i32
  }
  func.func @transform_3(%arg0: i32) -> (i32, i32, i32) {
    %c0_i32 = arith.constant 0 : i32
    %c0_i32_0 = arith.constant 0 : i32
    %c0_i32_1 = arith.constant 0 : i32
    %c0_i32_2 = arith.constant 0 : i32
    return %c0_i32, %c0_i32_0, %c0_i32_1 : i32, i32, i32
  }
  func.func @transform_4(%arg0: i32) -> (i32, i32, i32) {
    %c0_i32 = arith.constant 0 : i32
    %c0_i32_0 = arith.constant 0 : i32
    %c0_i32_1 = arith.constant 0 : i32
    %c0_i32_2 = arith.constant 0 : i32
    return %c0_i32, %c0_i32_0, %c0_i32_1 : i32, i32, i32
  }
  func.func @transform_5(%arg0: i32) -> (i32, i32) {
    %c0_i32 = arith.constant 0 : i32
    %c0_i32_0 = arith.constant 0 : i32
    %c0_i32_1 = arith.constant 0 : i32
    return %c0_i32, %c0_i32_0 : i32, i32
  }
  func.func @transform_6(%arg0: i32) -> (i32, i32) {
    %c0_i32 = arith.constant 0 : i32
    %c0_i32_0 = arith.constant 0 : i32
    %c0_i32_1 = arith.constant 0 : i32
    return %c0_i32, %c0_i32_0 : i32, i32
  }
  func.func @transform_7(%arg0: i32) -> (i32, i32) {
    %c0_i32 = arith.constant 0 : i32
    %c0_i32_0 = arith.constant 0 : i32
    return %arg0, %c0_i32 : i32, i32
  }
}

</mosaic_0001>

<llo_original>
// kernel: mlp_forward.1
$region0: #{mlp_forward.1}
  #allocation0 [shape = 'u32[]', space=smem, size = 0x4, offset = 0x4, fixed_abs, tag = 'smem constant byte address 0x4 - core index']
  #allocation1 [shape = 'u32[144,128]{1,0:T(1,128)}', space=vmem, size = 0x12000, scoped, tag = 'internal scratch']
  %s0 = inlined_call_operand.hbm [shape: f32[8,16], index: 0, kind: input, shape index: {}]
  %s1 = inlined_call_operand.hbm [shape: bf16[16,128], index: 1, kind: input, shape index: {}]
  %s2 = inlined_call_operand.vmem [shape: f32[1,128], index: 2, kind: input, shape index: {}]
  %s3 = inlined_call_operand.hbm [shape: bf16[2,128,128], index: 3, kind: input, shape index: {}]
  %s4 = inlined_call_operand.vmem [shape: f32[2,1,128], index: 4, kind: input, shape index: {}]
  %s5 = inlined_call_operand.hbm [shape: bf16[128,128], index: 5, kind: input, shape index: {}]
  %s6 = inlined_call_operand.vmem [shape: f32[1,128], index: 6, kind: input, shape index: {}]
  %s7 = inlined_call_operand.hbm [shape: f32[8,128], index: 7, kind: output, shape index: {}]
  %s8 = sld [smem:[#allocation0]]
  $region61: #{mlp_forward.1} parent=0
    _
  %s10 = ssub.s32 1, %s8
  %s11 = scalar_select 0, %s10, %s8
  $region1: #{mlp_forward.1} parent=0
    #allocation2 [shape = 'u8[4096]{0}', space=vmem, size = 0x1000, scoped, tag = 'input window, operand 0, single buffered']
    #allocation3 [shape = 's32[1]{0}', space=sflag, size = 0x4, scoped, tag = 'scoped memory for mlp_forward.1']
    #allocation4 [shape = 's32[1]{0}', space=sflag, size = 0x4, scoped, tag = 'scoped memory for mlp_forward.1']
    #allocation5 [shape = 'u8[4096]{0}', space=vmem, size = 0x1000, scoped, tag = 'input window, operand 1, single buffered']
    #allocation6 [shape = 's32[1]{0}', space=sflag, size = 0x4, scoped, tag = 'scoped memory for mlp_forward.1']
    #allocation7 [shape = 'u8[65536]{0}', space=vmem, size = 0x10000, scoped, tag = 'input window, operand 3, single buffered']
    #allocation8 [shape = 'u8[32768]{0}', space=vmem, size = 0x8000, scoped, tag = 'input window, operand 5, single buffered']
    #allocation9 [shape = 's32[1]{0}', space=sflag, size = 0x4, scoped, tag = 'scoped memory for mlp_forward.1']
    #allocation10 [shape = 'u8[4096]{0}', space=vmem, size = 0x1000, scoped, tag = 'output window, operand 0, single buffered']
    %12 = vsyncpa [#allocation3], 0
    %13 = vsyncpa [#allocation6], 0
    %14 = vsyncpa [#allocation9], 0
    %15 = vsyncpa [#allocation4], 0
    // Predicated region
    $region2: #{mlp_forward.1} parent=1 // pred_check
      _
    $region3: #{mlp_forward.1} parent=1 // pred_check_branch
      %17 = sbr.rel (0) target = $region5
    $region4: #{mlp_forward.1} parent=1 // pred_region
      %s19 = ssub.s32 128, 128
      %20 = vsyncadd [#allocation3], %s19
      %s22 = sshll.u32 [#allocation2], 4
      %s23 = int_to_ptr.vmem [resolvable:$true] %s22
      %25 = dma.hbm_to_vmem [thread:$0]  %s0, 128, %s23, [#allocation3]
    $region5: #{mlp_forward.1} parent=1 // pred_fallthru
      _
    // Predicated region
    $region6: #{mlp_forward.1} parent=1 // pred_check
      _
    $region7: #{mlp_forward.1} parent=1 // pred_check_branch
      %27 = sbr.rel (0) target = $region9
    $region8: #{mlp_forward.1} parent=1 // pred_region
      %s29 = ssub.s32 128, 128
      %30 = vsyncadd [#allocation6], %s29
      %s31 = sshll.u32 [#allocation5], 4
      %s32 = int_to_ptr.vmem [resolvable:$true] %s31
      %37 = dma.hbm_to_vmem [thread:$0]  %s1, 128, %s32, [#allocation6], 64, 64, 4
    $region9: #{mlp_forward.1} parent=1 // pred_fallthru
      _
    // Predicated region
    $region10: #{mlp_forward.1} parent=1 // pred_check
      _
    $region11: #{mlp_forward.1} parent=1 // pred_check_branch
      %39 = sbr.rel (0) target = $region13
    $region12: #{mlp_forward.1} parent=1 // pred_region
      _
    $region13: #{mlp_forward.1} parent=1 // pred_fallthru
      _
    // Predicated region
    $region14: #{mlp_forward.1} parent=1 // pred_check
      _
    $region15: #{mlp_forward.1} parent=1 // pred_check_branch
      %41 = sbr.rel (0) target = $region17
    $region16: #{mlp_forward.1} parent=1 // pred_region
      %s43 = ssub.s32 2048, 2048
      %44 = vsyncadd [#allocation6], %s43
      %s45 = sshll.u32 [#allocation7], 4
      %s46 = int_to_ptr.vmem [resolvable:$true] %s45
      %51 = dma.hbm_to_vmem [thread:$0]  %s3, 2048, %s46, [#allocation6], 64, 64, 4
    $region17: #{mlp_forward.1} parent=1 // pred_fallthru
      _
    // Predicated region
    $region18: #{mlp_forward.1} parent=1 // pred_check
      _
    $region19: #{mlp_forward.1} parent=1 // pred_check_branch
      %53 = sbr.rel (0) target = $region21
    $region20: #{mlp_forward.1} parent=1 // pred_region
      _
    $region21: #{mlp_forward.1} parent=1 // pred_fallthru
      _
    // Predicated region
    $region22: #{mlp_forward.1} parent=1 // pred_check
      _
    $region23: #{mlp_forward.1} parent=1 // pred_check_branch
      %55 = sbr.rel (0) target = $region25
    $region24: #{mlp_forward.1} parent=1 // pred_region
      %s57 = ssub.s32 1024, 1024
      %58 = vsyncadd [#allocation9], %s57
      %s59 = sshll.u32 [#allocation8], 4
      %s60 = int_to_ptr.vmem [resolvable:$true] %s59
      %65 = dma.hbm_to_vmem [thread:$0]  %s5, 1024, %s60, [#allocation9], 64, 64, 4
    $region25: #{mlp_forward.1} parent=1 // pred_fallthru
      _
    // Predicated region
    $region26: #{mlp_forward.1} parent=1 // pred_check
      _
    $region27: #{mlp_forward.1} parent=1 // pred_check_branch
      %67 = sbr.rel (0) target = $region29
    $region28: #{mlp_forward.1} parent=1 // pred_region
      _
    $region29: #{mlp_forward.1} parent=1 // pred_fallthru
      _
    // Predicated region
    $region30: #{mlp_forward.1} parent=1 // pred_check
      _
    $region31: #{mlp_forward.1} parent=1 // pred_check_branch
      %69 = sbr.rel (0) target = $region33
    $region32: #{mlp_forward.1} parent=1 // pred_region
      %70 = dma.done [#allocation3], 128
    $region33: #{mlp_forward.1} parent=1 // pred_fallthru
      _
    // Predicated region
    $region34: #{mlp_forward.1} parent=1 // pred_check
      _
    $region35: #{mlp_forward.1} parent=1 // pred_check_branch
      %72 = sbr.rel (0) target = $region37
    $region36: #{mlp_forward.1} parent=1 // pred_region
      %73 = dma.done [#allocation6], 128
    $region37: #{mlp_forward.1} parent=1 // pred_fallthru
      _
    // Predicated region
    $region38: #{mlp_forward.1} parent=1 // pred_check
      _
    $region39: #{mlp_forward.1} parent=1 // pred_check_branch
      %75 = sbr.rel (0) target = $region41
    $region40: #{mlp_forward.1} parent=1 // pred_region
      %76 = dma.done [#allocation6], 2048
    $region41: #{mlp_forward.1} parent=1 // pred_fallthru
      _
    // Predicated region
    $region42: #{mlp_forward.1} parent=1 // pred_check
      _
    $region43: #{mlp_forward.1} parent=1 // pred_check_branch
      %78 = sbr.rel (0) target = $region45
    $region44: #{mlp_forward.1} parent=1 // pred_region
      %79 = dma.done [#allocation9], 1024
    $region45: #{mlp_forward.1} parent=1 // pred_fallthru
      _
    %v81 = vld [vmem:[#allocation2] sm:$0xff]
    %v82 = vpack.c.bf16 %v81, %v81
    %v83 = vld [vmem:[#allocation5] sm:$0xf]
    %v84 = vld [vmem:[#allocation5 + $0x4] sm:$0xf]
    %v85 = vld [vmem:[%s2] sm:$0x1]
    %v87 = vlaneseq
    %v88 = vshrl.u32 %v87, 7
    %v89 = vsub.s32 0, %v88
    %v90 = vrot.slane %v85, %v89
    %v94 = vunpack.c.l.b16 %v83
    %v95 = vunpack.c.l.b16 %v84
    %v96 = vpack.c.b16 %v95, %v94
    %vm98 = vcmask 130048
    %v100 = vsel %vm98, %v82, 0
    %102 = vmatprep.subr.bf16.mxu0 0
    %103 = vmatpush1.bf16.msra.mxu0 0
    %104 = vmatprep.subr.bf16.mxu0 0
    %105 = vmatpush1.bf16.msra.mxu0 0
    %106 = vmatprep.subr.bf16.mxu0 0
    %107 = vmatpush1.bf16.msra.mxu0 0
    %108 = vmatprep.subr.bf16.mxu0 0
    %109 = vmatpush1.bf16.msra.mxu0 0
    %110 = vmatprep.subr.bf16.mxu0 0
    %111 = vmatpush1.bf16.msra.mxu0 0
    %112 = vmatprep.subr.bf16.mxu0 0
    %113 = vmatpush1.bf16.msra.mxu0 0
    %114 = vmatprep.subr.bf16.mxu0 0
    %115 = vmatpush1.bf16.msra.mxu0 0
    %116 = vmatprep.subr.bf16.mxu0 0
    %117 = vmatpush1.bf16.msra.mxu0 %v96
    %118 = vmatprep.subr.bf16.mxu0 0
    %119 = vmatpush2.bf16.msra.mxu0 0
    %120 = vmatprep.subr.bf16.mxu0 0
    %121 = vmatpush2.bf16.msra.mxu0 0
    %122 = vmatprep.subr.bf16.mxu0 0
    %123 = vmatpush2.bf16.msra.mxu0 0
    %124 = vmatprep.subr.bf16.mxu0 0
    %125 = vmatpush2.bf16.msra.mxu0 0
    %126 = vmatprep.subr.bf16.mxu0 0
    %127 = vmatpush2.bf16.msra.mxu0 0
    %128 = vmatprep.subr.bf16.mxu0 0
    %129 = vmatpush2.bf16.msra.mxu0 0
    %130 = vmatprep.subr.bf16.mxu0 0
    %131 = vmatpush2.bf16.msra.mxu0 0
    %132 = vmatprep.subr.bf16.mxu0 0
    %133 = vmatpush2.bf16.msra.mxu0 0
    %134 = vmatprep.mubr.bf16.mxu0 0
    %135 = vmatmul.mubr.bf16.gmra.mxu0 %v100
    %v136 = vpop.f32.mrf.mxu0
    %v137 = vadd.f32 %v90, %v136
    %v138 = vpop.f32.mrf.mxu0
    %v139 = vpop.f32.mrf.mxu0
    %v140 = vpop.f32.mrf.mxu0
    %141 = vdwg.mxu0
    %v142 = vmax.f32 %v137, 0.0
    %v143 = vpack.c.bf16 %v142, %v142
    loop: start=0, step=1, limit=2
    $region46: #{mlp_forward.1} parent=1 // loop_pre_header
      _
    $region47: #{mlp_forward.1} parent=1 // loop_header
      %s145 = sphi 0, %s149
      %p146 = scmp.ge.s32.totalorder %s145, 2
      %v150 = vphi %v143, %v267
    $region48: #{mlp_forward.1} parent=1 // loop_header_branch
      %148 = sbr.rel (%p146) target = $region52
    $region49: #{mlp_forward.1} parent=1 // loop_body
      %s151 = smul.u32 %s145, 16
      %s152 = smul.addr %s151, 4
      %s153 = scalar_lea.vmem [#allocation7], %s152
      %v154 = vld [vmem:[%s153] sm:$0xf]
      %v155 = vld [vmem:[%s153 + $0x4] sm:$0xf]
      %v156 = vld [vmem:[%s153 + $0x8] sm:$0xf]
      %v157 = vld [vmem:[%s153 + $0xc] sm:$0xf]
      %v158 = vld [vmem:[%s153 + $0x10] sm:$0xf]
      %v159 = vld [vmem:[%s153 + $0x14] sm:$0xf]
      %v160 = vld [vmem:[%s153 + $0x18] sm:$0xf]
      %v161 = vld [vmem:[%s153 + $0x1c] sm:$0xf]
      %v162 = vld [vmem:[%s153 + $0x20] sm:$0xf]
      %v163 = vld [vmem:[%s153 + $0x24] sm:$0xf]
      %v164 = vld [vmem:[%s153 + $0x28] sm:$0xf]
      %v165 = vld [vmem:[%s153 + $0x2c] sm:$0xf]
      %v166 = vld [vmem:[%s153 + $0x30] sm:$0xf]
      %v167 = vld [vmem:[%s153 + $0x34] sm:$0xf]
      %v168 = vld [vmem:[%s153 + $0x38] sm:$0xf]
      %v169 = vld [vmem:[%s153 + $0x3c] sm:$0xf]
      %s170 = scalar_lea.vmem %s4, %s145
      %v171 = vld [vmem:[%s170] sm:$0x1]
      %v173 = vlaneseq
      %v174 = vshrl.u32 %v173, 7
      %v175 = vsub.s32 0, %v174
      %v176 = vrot.slane %v171, %v175
      %v194 = vunpack.c.l.b16 %v154
      %v195 = vunpack.c.l.b16 %v155
      %v196 = vunpack.c.l.b16 %v156
      %v197 = vunpack.c.l.b16 %v157
      %v198 = vunpack.c.l.b16 %v158
      %v199 = vunpack.c.l.b16 %v159
      %v200 = vunpack.c.l.b16 %v160
      %v201 = vunpack.c.l.b16 %v161
      %v202 = vunpack.c.l.b16 %v162
      %v203 = vunpack.c.l.b16 %v163
      %v204 = vunpack.c.l.b16 %v164
      %v205 = vunpack.c.l.b16 %v165
      %v206 = vunpack.c.l.b16 %v166
      %v207 = vunpack.c.l.b16 %v167
      %v208 = vunpack.c.l.b16 %v168
      %v209 = vunpack.c.l.b16 %v169
      %v210 = vpack.c.b16 %v195, %v194
      %v211 = vpack.c.b16 %v197, %v196
      %v212 = vpack.c.b16 %v199, %v198
      %v213 = vpack.c.b16 %v201, %v200
      %v214 = vpack.c.b16 %v203, %v202
      %v215 = vpack.c.b16 %v205, %v204
      %v216 = vpack.c.b16 %v207, %v206
      %v217 = vpack.c.b16 %v209, %v208
      %226 = vmatprep.subr.bf16.mxu0 0
      %227 = vmatpush1.bf16.msra.mxu0 %v217
      %228 = vmatprep.subr.bf16.mxu0 0
      %229 = vmatpush1.bf16.msra.mxu0 %v216
      %230 = vmatprep.subr.bf16.mxu0 0
      %231 = vmatpush1.bf16.msra.mxu0 %v215
      %232 = vmatprep.subr.bf16.mxu0 0
      %233 = vmatpush1.bf16.msra.mxu0 %v214
      %234 = vmatprep.subr.bf16.mxu0 0
      %235 = vmatpush1.bf16.msra.mxu0 %v213
      %236 = vmatprep.subr.bf16.mxu0 0
      %237 = vmatpush1.bf16.msra.mxu0 %v212
      %238 = vmatprep.subr.bf16.mxu0 0
      %239 = vmatpush1.bf16.msra.mxu0 %v211
      %240 = vmatprep.subr.bf16.mxu0 0
      %241 = vmatpush1.bf16.msra.mxu0 %v210
      %242 = vmatprep.subr.bf16.mxu0 0
      %243 = vmatpush2.bf16.msra.mxu0 0
      %244 = vmatprep.subr.bf16.mxu0 0
      %245 = vmatpush2.bf16.msra.mxu0 0
      %246 = vmatprep.subr.bf16.mxu0 0
      %247 = vmatpush2.bf16.msra.mxu0 0
      %248 = vmatprep.subr.bf16.mxu0 0
      %249 = vmatpush2.bf16.msra.mxu0 0
      %250 = vmatprep.subr.bf16.mxu0 0
      %251 = vmatpush2.bf16.msra.mxu0 0
      %252 = vmatprep.subr.bf16.mxu0 0
      %253 = vmatpush2.bf16.msra.mxu0 0
      %254 = vmatprep.subr.bf16.mxu0 0
      %255 = vmatpush2.bf16.msra.mxu0 0
      %256 = vmatprep.subr.bf16.mxu0 0
      %257 = vmatpush2.bf16.msra.mxu0 0
      %258 = vmatprep.mubr.bf16.mxu0 0
      %259 = vmatmul.mubr.bf16.gmra.mxu0 %v150
      %v260 = vpop.f32.mrf.mxu0
      %v261 = vadd.f32 %v176, %v260
      %v262 = vpop.f32.mrf.mxu0
      %v263 = vpop.f32.mrf.mxu0
      %v264 = vpop.f32.mrf.mxu0
      %265 = vdwg.mxu0
      %v266 = vmax.f32 %v261, 0.0
      %v267 = vpack.c.bf16 %v266, %v266
    $region50: #{mlp_forward.1} parent=1 // loop_footer
      %s149 = sadd.s32 1, %s145
    $region51: #{mlp_forward.1} parent=1 // loop_footer_branch
      %144 = sbr.rel target = $region47
    $region52: #{mlp_forward.1} parent=1 // loop_exit
      _
    %v268 = vld [vmem:[#allocation8] sm:$0xf]
    %v269 = vld [vmem:[#allocation8 + $0x4] sm:$0xf]
    %v270 = vld [vmem:[#allocation8 + $0x8] sm:$0xf]
    %v271 = vld [vmem:[#allocation8 + $0xc] sm:$0xf]
    %v272 = vld [vmem:[#allocation8 + $0x10] sm:$0xf]
    %v273 = vld [vmem:[#allocation8 + $0x14] sm:$0xf]
    %v274 = vld [vmem:[#allocation8 + $0x18] sm:$0xf]
    %v275 = vld [vmem:[#allocation8 + $0x1c] sm:$0xf]
    %v276 = vld [vmem:[#allocation8 + $0x20] sm:$0xf]
    %v277 = vld [vmem:[#allocation8 + $0x24] sm:$0xf]
    %v278 = vld [vmem:[#allocation8 + $0x28] sm:$0xf]
    %v279 = vld [vmem:[#allocation8 + $0x2c] sm:$0xf]
    %v280 = vld [vmem:[#allocation8 + $0x30] sm:$0xf]
    %v281 = vld [vmem:[#allocation8 + $0x34] sm:$0xf]
    %v282 = vld [vmem:[#allocation8 + $0x38] sm:$0xf]
    %v283 = vld [vmem:[#allocation8 + $0x3c] sm:$0xf]
    %v284 = vld [vmem:[%s6] sm:$0x1]
    %v286 = vlaneseq
    %v287 = vshrl.u32 %v286, 7
    %v288 = vsub.s32 0, %v287
    %v289 = vrot.slane %v284, %v288
    %v307 = vunpack.c.l.b16 %v268
    %v308 = vunpack.c.l.b16 %v269
    %v309 = vunpack.c.l.b16 %v270
    %v310 = vunpack.c.l.b16 %v271
    %v311 = vunpack.c.l.b16 %v272
    %v312 = vunpack.c.l.b16 %v273
    %v313 = vunpack.c.l.b16 %v274
    %v314 = vunpack.c.l.b16 %v275
    %v315 = vunpack.c.l.b16 %v276
    %v316 = vunpack.c.l.b16 %v277
    %v317 = vunpack.c.l.b16 %v278
    %v318 = vunpack.c.l.b16 %v279
    %v319 = vunpack.c.l.b16 %v280
    %v320 = vunpack.c.l.b16 %v281
    %v321 = vunpack.c.l.b16 %v282
    %v322 = vunpack.c.l.b16 %v283
    %v323 = vpack.c.b16 %v308, %v307
    %v324 = vpack.c.b16 %v310, %v309
    %v325 = vpack.c.b16 %v312, %v311
    %v326 = vpack.c.b16 %v314, %v313
    %v327 = vpack.c.b16 %v316, %v315
    %v328 = vpack.c.b16 %v318, %v317
    %v329 = vpack.c.b16 %v320, %v319
    %v330 = vpack.c.b16 %v322, %v321
    %339 = vmatprep.subr.bf16.mxu0 0
    %340 = vmatpush1.bf16.msra.mxu0 %v330
    %341 = vmatprep.subr.bf16.mxu0 0
    %342 = vmatpush1.bf16.msra.mxu0 %v329
    %343 = vmatprep.subr.bf16.mxu0 0
    %344 = vmatpush1.bf16.msra.mxu0 %v328
    %345 = vmatprep.subr.bf16.mxu0 0
    %346 = vmatpush1.bf16.msra.mxu0 %v327
    %347 = vmatprep.subr.bf16.mxu0 0
    %348 = vmatpush1.bf16.msra.mxu0 %v326
    %349 = vmatprep.subr.bf16.mxu0 0
    %350 = vmatpush1.bf16.msra.mxu0 %v325
    %351 = vmatprep.subr.bf16.mxu0 0
    %352 = vmatpush1.bf16.msra.mxu0 %v324
    %353 = vmatprep.subr.bf16.mxu0 0
    %354 = vmatpush1.bf16.msra.mxu0 %v323
    %355 = vmatprep.subr.bf16.mxu0 0
    %356 = vmatpush2.bf16.msra.mxu0 0
    %357 = vmatprep.subr.bf16.mxu0 0
    %358 = vmatpush2.bf16.msra.mxu0 0
    %359 = vmatprep.subr.bf16.mxu0 0
    %360 = vmatpush2.bf16.msra.mxu0 0
    %361 = vmatprep.subr.bf16.mxu0 0
    %362 = vmatpush2.bf16.msra.mxu0 0
    %363 = vmatprep.subr.bf16.mxu0 0
    %364 = vmatpush2.bf16.msra.mxu0 0
    %365 = vmatprep.subr.bf16.mxu0 0
    %366 = vmatpush2.bf16.msra.mxu0 0
    %367 = vmatprep.subr.bf16.mxu0 0
    %368 = vmatpush2.bf16.msra.mxu0 0
    %369 = vmatprep.subr.bf16.mxu0 0
    %370 = vmatpush2.bf16.msra.mxu0 0
    %371 = vmatprep.mubr.bf16.mxu0 0
    %372 = vmatmul.mubr.bf16.gmra.mxu0 %v150
    %v373 = vpop.f32.mrf.mxu0
    %v374 = vadd.f32 %v289, %v373
    %v375 = vpop.f32.mrf.mxu0
    %v376 = vpop.f32.mrf.mxu0
    %v377 = vpop.f32.mrf.mxu0
    %378 = vdwg.mxu0
    %379 = vst [vmem:[#allocation10] sm:$0xff] %v374
    // Predicated region
    $region53: #{mlp_forward.1} parent=1 // pred_check
      _
    $region54: #{mlp_forward.1} parent=1 // pred_check_branch
      %381 = sbr.rel (0) target = $region56
    $region55: #{mlp_forward.1} parent=1 // pred_region
      %s383 = ssub.s32 128, 128
      %384 = vsyncadd [#allocation4], %s383
      %s386 = sshll.u32 [#allocation10], 4
      %s387 = int_to_ptr.vmem [resolvable:$true] %s386
      %389 = dma.vmem_to_hbm [thread:$0]  %s387, 128, %s7, [#allocation4]
    $region56: #{mlp_forward.1} parent=1 // pred_fallthru
      _
    // Predicated region
    $region57: #{mlp_forward.1} parent=1 // pred_check
      _
    $region58: #{mlp_forward.1} parent=1 // pred_check_branch
      %391 = sbr.rel (0) target = $region60
    $region59: #{mlp_forward.1} parent=1 // pred_region
      %392 = dma.done [#allocation4], 128
    $region60: #{mlp_forward.1} parent=1 // pred_fallthru
      _
    %393 = vsyncpa [#allocation3], 1
    %394 = vsyncpa [#allocation6], 1
    %395 = vsyncpa [#allocation9], 1
    %396 = vsyncpa [#allocation4], 1

</llo_original>
